<compile_context>
chip_gen: v5e
topology: v5e:2x2
jax: 0.10.0
libtpu: 0.0.40
codegen_flags: <defaults>
</compile_context>

<pallas_src>
import jax
import jax.numpy as jnp
from jax.experimental import pallas as pl
from jax.experimental.pallas import tpu as pltpu


def _round_up(x, m):
    return (x + m - 1) // m * m


def _vision_tower_kernel(x_ref, w1_ref, b1_ref, w2_ref, b2_ref, o_ref):
    """One grid step = one tile of TILE_M tokens (rows of the flattened B*N axis).

    x_ref : (TILE_M, K)  bf16 flattened patches
    w1_ref: (K, C)       bf16 patch-embedding conv weight (flattened Conv2d order)
    b1_ref: (1, C)       f32  patch-embedding bias
    w2_ref: (C, C)       bf16 pointwise projection weight
    b2_ref: (1, C)       f32  projection bias
    o_ref : (TILE_M, C)  tokens in feature_select layout, images.dtype
    """
    # Patch-embedding "conv" (kernel == stride == patch) as a bf16 MXU matmul
    # with f32 accumulation.
    h = jnp.dot(x_ref[...], w1_ref[...], preferred_element_type=jnp.float32)
    h = h + b1_ref[...]
    # TODO(synk): PyTorch nn.GELU defaults to exact erf; tanh-approx GELU used
    # here (matched exactly by the pure-JAX reference) for lowering safety.
    h = jax.nn.gelu(h)
    # Cast the intermediate back to bf16 so the second MXU pass runs at bf16
    # rate and the live f32 tensor stays small.
    y = jnp.dot(h.astype(jnp.bfloat16), w2_ref[...],
                preferred_element_type=jnp.float32)
    y = y + b2_ref[...]
    o_ref[...] = y.astype(o_ref.dtype)


def _vmem_bytes(tile_m, K, C, out_bytes):
    """Rough resident-VMEM estimate for one kernel instance."""
    io = 2 * tile_m * K * 2 + 2 * tile_m * C * out_bytes    # double-buffered x / out tiles
    wts = 2 * (K * C * 2 + C * C * 2 + 2 * C * 4)           # weights (conservatively 2-buffered)
    tmp = 3 * tile_m * C * 4                                 # f32 h + elementwise temporaries
    return io + wts + tmp


def mobileclip_vision_tower_forward(images, params, patch_size, tile_m=512):
    """images: (B, Cin, H, W) in PyTorch NCHW convention."""
    B, Cin, H, W = images.shape
    p = patch_size
    Hp, Wp = H // p, W // p
    N = Hp * Wp
    K = Cin * p * p
    C = params["w2"].shape[0]
    M = B * N

    # --- glue: patchify NCHW -> (B*N, K), channel-major inside each patch
    # (matches torch Conv2d weight.reshape(Cout, Cin*p*p) ordering).  The bf16
    # cast is fused by XLA into the same transpose pass.  No padding passes.
    x = images.astype(jnp.bfloat16).reshape(B, Cin, Hp, p, Wp, p)
    x = jnp.transpose(x, (0, 2, 4, 1, 3, 5)).reshape(M, K)

    w1 = params["w1"].astype(jnp.bfloat16)                  # (K, C)
    b1 = params["b1"].astype(jnp.float32).reshape(1, C)
    w2 = params["w2"].astype(jnp.bfloat16)                  # (C, C)
    b2 = params["b2"].astype(jnp.float32).reshape(1, C)

    out_dtype = images.dtype
    out_bytes = jnp.dtype(out_dtype).itemsize

    # --- tile size: multiple of 16 (bf16 sublane pack); >= 2 grid steps when
    # possible (megacore / v7x dual TC); capped by a v7x-safe VMEM budget.
    tile = max(16, min(_round_up(tile_m, 16), _round_up(M, 16)))
    if M > 16 and pl.cdiv(M, tile) < 2:
        tile = _round_up(pl.cdiv(M, 2), 16)
    vmem_cap = 40 * 1024 * 1024                             # headroom under v7x's 64 MiB
    while tile > 256 and _vmem_bytes(tile, K, C, out_bytes) > vmem_cap:
        tile -= 256
    grid = (pl.cdiv(M, tile),)

    vmem_limit = int(min(64 * 1024 * 1024,
                         max(32 * 1024 * 1024,
                             _vmem_bytes(tile, K, C, out_bytes) + (8 << 20))))

    cost = pl.CostEstimate(
        flops=2 * M * K * C + 2 * M * C * C,
        transcendentals=M * C,
        bytes_accessed=(M * K * 2 + M * C * out_bytes
                        + (K * C + C * C) * 2 + 2 * C * 4),
    )

    out = pl.pallas_call(
        _vision_tower_kernel,
        out_shape=jax.ShapeDtypeStruct((M, C), out_dtype),
        grid_spec=pltpu.PrefetchScalarGridSpec(
            num_scalar_prefetch=0,
            grid=grid,
            in_specs=[
                pl.BlockSpec((tile, K), lambda i: (i, 0)),
                pl.BlockSpec((K, C), lambda i: (0, 0)),
                pl.BlockSpec((1, C), lambda i: (0, 0)),
                pl.BlockSpec((C, C), lambda i: (0, 0)),
                pl.BlockSpec((1, C), lambda i: (0, 0)),
            ],
            out_specs=pl.BlockSpec((tile, C), lambda i: (i, 0)),
        ),
        compiler_params=pltpu.CompilerParams(
            dimension_semantics=("parallel",),
            vmem_limit_bytes=vmem_limit,
        ),
        cost_estimate=cost,
    )(x, w1, b1, w2, b2)

    # (B, num_patches, C) is exactly the layout feature_select produces from
    # the (B, C, Hp, Wp) embedding map; the reshape is a free metadata view.
    return out.reshape(B, N, C)


def init_params(key, patch_size, cin, embed_dim):
    K = cin * patch_size * patch_size
    k1, k2, k3, k4 = jax.random.split(key, 4)
    return {
        "w1": jax.random.normal(k1, (K, embed_dim), jnp.float32) * 0.02,
        "b1": jax.random.normal(k2, (embed_dim,), jnp.float32) * 0.01,
        "w2": jax.random.normal(k3, (embed_dim, embed_dim), jnp.float32) * 0.02,
        "b2": jax.random.normal(k4, (embed_dim,), jnp.float32) * 0.01,
    }


def _reference(images, params, patch_size):
    """Pure-JAX reference with the same bf16-operand / f32-accum numerics."""
    B, Cin, H, W = images.shape
    p = patch_size
    Hp, Wp = H // p, W // p
    x = images.astype(jnp.bfloat16).reshape(B, Cin, Hp, p, Wp, p)
    x = jnp.transpose(x, (0, 2, 4, 1, 3, 5)).reshape(B, Hp * Wp, Cin * p * p)
    w1 = params["w1"].astype(jnp.bfloat16)
    w2 = params["w2"].astype(jnp.bfloat16)
    h = jnp.einsum("bnk,kc->bnc", x, w1,
                   preferred_element_type=jnp.float32) + params["b1"]
    h = jax.nn.gelu(h)
    y = jnp.einsum("bnc,cd->bnd", h.astype(jnp.bfloat16), w2,
                   preferred_element_type=jnp.float32) + params["b2"]
    return y.astype(images.dtype)


if __name__ == "__main__":
    key = jax.random.PRNGKey(0)
    kp, kx = jax.random.split(key)

    # Small shapes consistent with the module: B=2 RGB images,
    # input_image_size=16, patch_size=4 -> 16 patches/image, embed_dim=32.
    B, Cin, H, W = 2, 3, 16, 16
    patch_size = 4
    embed_dim = 32

    images = jax.random.normal(kx, (B, Cin, H, W), jnp.float32)
    params = init_params(kp, patch_size, Cin, embed_dim)

    feats = mobileclip_vision_tower_forward(images, params, patch_size)
    feats = jax.block_until_ready(feats)

    ref = _reference(images, params, patch_size)
    N = (H // patch_size) * (W // patch_size)
    assert feats.shape == (B, N, embed_dim)
    assert feats.dtype == images.dtype
    assert jnp.allclose(feats, ref, atol=2e-2, rtol=2e-2)

    print("KERNEL_OK")
</pallas_src>

<mosaic_0001>
module attributes {stable_mosaic.version = 11 : i64} {
  func.func @_vision_tower_kernel(%arg0: i32, %arg1: memref<16x48xbf16, #tpu.memory_space<vmem>>, %arg2: memref<48x32xbf16, #tpu.memory_space<vmem>>, %arg3: memref<1x32xf32, #tpu.memory_space<vmem>>, %arg4: memref<32x32xbf16, #tpu.memory_space<vmem>>, %arg5: memref<1x32xf32, #tpu.memory_space<vmem>>, %arg6: memref<16x32xf32, #tpu.memory_space<vmem>>) attributes {dimension_semantics = [#tpu.dimension_semantics<parallel>], iteration_bounds = array<i64: 2>, scalar_prefetch = 0 : i64, scratch_operands = 0 : i64, tpu.core_type = #tpu.core_type<tc>, window_params = [{transform_indices = @transform_0, window_bounds = array<i64: 16, 48>}, {pipeline_mode = #tpu.pipeline_mode<synchronous>, transform_indices = @transform_1, window_bounds = array<i64: 48, 32>}, {pipeline_mode = #tpu.pipeline_mode<synchronous>, transform_indices = @transform_2, window_bounds = array<i64: 1, 32>}, {pipeline_mode = #tpu.pipeline_mode<synchronous>, transform_indices = @transform_3, window_bounds = array<i64: 32, 32>}, {pipeline_mode = #tpu.pipeline_mode<synchronous>, transform_indices = @transform_4, window_bounds = array<i64: 1, 32>}, {transform_indices = @transform_5, window_bounds = array<i64: 16, 32>}]} {
    %c0 = arith.constant 0 : index
    %c0_0 = arith.constant 0 : index
    %0 = vector.load %arg1[%c0, %c0_0] : memref<16x48xbf16, #tpu.memory_space<vmem>>, vector<16x48xbf16>
    %c0_1 = arith.constant 0 : index
    %c0_2 = arith.constant 0 : index
    %1 = vector.load %arg2[%c0_1, %c0_2] : memref<48x32xbf16, #tpu.memory_space<vmem>>, vector<48x32xbf16>
    %cst = arith.constant dense<0.000000e+00> : vector<16x32xf32>
    %2 = tpu.matmul %0, %1, %cst {dimension_numbers = #tpu.dot_dimension_numbers<[1], [0], [0], [1], [0, 0, 1, 1], [], []>} : vector<16x48xbf16>, vector<48x32xbf16>, vector<16x32xf32> -> vector<16x32xf32>
    %c0_3 = arith.constant 0 : index
    %c0_4 = arith.constant 0 : index
    %3 = vector.load %arg3[%c0_3, %c0_4] : memref<1x32xf32, #tpu.memory_space<vmem>>, vector<1x32xf32>
    %4 = vector.broadcast %3 : vector<1x32xf32> to vector<16x32xf32>
    %5 = arith.addf %2, %4 : vector<16x32xf32>
    %6 = arith.mulf %5, %5 : vector<16x32xf32>
    %7 = arith.mulf %5, %6 : vector<16x32xf32>
    %cst_5 = arith.constant 4.471500e-02 : f32
    %8 = vector.broadcast %cst_5 : f32 to vector<16x32xf32>
    %9 = arith.mulf %8, %7 : vector<16x32xf32>
    %10 = arith.addf %5, %9 : vector<16x32xf32>
    %cst_6 = arith.constant 0.797884583 : f32
    %11 = vector.broadcast %cst_6 : f32 to vector<16x32xf32>
    %12 = arith.mulf %11, %10 : vector<16x32xf32>
    %13 = math.tanh %12 : vector<16x32xf32>
    %cst_7 = arith.constant 1.000000e+00 : f32
    %14 = vector.broadcast %cst_7 : f32 to vector<16x32xf32>
    %15 = arith.addf %14, %13 : vector<16x32xf32>
    %cst_8 = arith.constant 5.000000e-01 : f32
    %16 = vector.broadcast %cst_8 : f32 to vector<16x32xf32>
    %17 = arith.mulf %16, %15 : vector<16x32xf32>
    %18 = arith.mulf %5, %17 : vector<16x32xf32>
    %19 = arith.truncf %18 : vector<16x32xf32> to vector<16x32xbf16>
    %c0_9 = arith.constant 0 : index
    %c0_10 = arith.constant 0 : index
    %20 = vector.load %arg4[%c0_9, %c0_10] : memref<32x32xbf16, #tpu.memory_space<vmem>>, vector<32x32xbf16>
    %cst_11 = arith.constant dense<0.000000e+00> : vector<16x32xf32>
    %21 = tpu.matmul %19, %20, %cst_11 {dimension_numbers = #tpu.dot_dimension_numbers<[1], [0], [0], [1], [0, 0, 1, 1], [], []>} : vector<16x32xbf16>, vector<32x32xbf16>, vector<16x32xf32> -> vector<16x32xf32>
    %c0_12 = arith.constant 0 : index
    %c0_13 = arith.constant 0 : index
    %22 = vector.load %arg5[%c0_12, %c0_13] : memref<1x32xf32, #tpu.memory_space<vmem>>, vector<1x32xf32>
    %23 = vector.broadcast %22 : vector<1x32xf32> to vector<16x32xf32>
    %24 = arith.addf %21, %23 : vector<16x32xf32>
    %c0_14 = arith.constant 0 : index
    %c0_15 = arith.constant 0 : index
    %25 = vector.load %arg6[%c0_14, %c0_15] : memref<16x32xf32, #tpu.memory_space<vmem>>, vector<16x32xf32>
    tpu.vector_store %arg6[%c0_14, %c0_15], %24 {strides = array<i32>} : memref<16x32xf32, #tpu.memory_space<vmem>>, vector<16x32xf32>,
    return
  }
  func.func @transform_0(%arg0: i32) -> (i32, i32) {
    %c0_i32 = arith.constant 0 : i32
    %c0_i32_0 = arith.constant 0 : i32
    return %arg0, %c0_i32 : i32, i32
  }
  func.func @transform_1(%arg0: i32) -> (i32, i32) {
    %c0_i32 = arith.constant 0 : i32
    %c0_i32_0 = arith.constant 0 : i32
    %c0_i32_1 = arith.constant 0 : i32
    return %c0_i32, %c0_i32_0 : i32, i32
  }
  func.func @transform_2(%arg0: i32) -> (i32, i32) {
    %c0_i32 = arith.constant 0 : i32
    %c0_i32_0 = arith.constant 0 : i32
    %c0_i32_1 = arith.constant 0 : i32
    return %c0_i32, %c0_i32_0 : i32, i32
  }
  func.func @transform_3(%arg0: i32) -> (i32, i32) {
    %c0_i32 = arith.constant 0 : i32
    %c0_i32_0 = arith.constant 0 : i32
    %c0_i32_1 = arith.constant 0 : i32
    return %c0_i32, %c0_i32_0 : i32, i32
  }
  func.func @transform_4(%arg0: i32) -> (i32, i32) {
    %c0_i32 = arith.constant 0 : i32
    %c0_i32_0 = arith.constant 0 : i32
    %c0_i32_1 = arith.constant 0 : i32
    return %c0_i32, %c0_i32_0 : i32, i32
  }
  func.func @transform_5(%arg0: i32) -> (i32, i32) {
    %c0_i32 = arith.constant 0 : i32
    %c0_i32_0 = arith.constant 0 : i32
    return %arg0, %c0_i32 : i32, i32
  }
}

</mosaic_0001>

<llo_original>
// kernel: tpu_custom_call.1
$region0: #{tpu_custom_call.1}
  #allocation0 [shape = 'u32[]', space=smem, size = 0x4, offset = 0x4, fixed_abs, tag = 'smem constant byte address 0x4 - core index']
  #allocation1 [shape = 'u32[72,128]{1,0:T(1,128)}', space=vmem, size = 0x9000, scoped, tag = 'internal scratch']
  %s0 = inlined_call_operand.vmem [shape: bf16[32,48], index: 0, kind: input, shape index: {}]
  %s1 = inlined_call_operand.vmem [shape: bf16[48,32], index: 1, kind: input, shape index: {}]
  %s2 = inlined_call_operand.vmem [shape: f32[1,32], index: 2, kind: input, shape index: {}]
  %s3 = inlined_call_operand.vmem [shape: bf16[32,32], index: 3, kind: input, shape index: {}]
  %s4 = inlined_call_operand.vmem [shape: f32[1,32], index: 4, kind: input, shape index: {}]
  %s5 = inlined_call_operand.hbm [shape: f32[32,32], index: 5, kind: output, shape index: {}]
  %s6 = sld [smem:[#allocation0]]
  $region53: #{tpu_custom_call.1} parent=0
    _
  %s8 = ssub.s32 1, %s6
  %s9 = scalar_select 0, %s8, %s6
  $region1: #{tpu_custom_call.1} parent=0
    #allocation2 [shape = 'u8[16384]{0}', space=vmem, size = 0x4000, scoped, tag = 'output window, operand 0']
    #allocation3 [shape = 's32[2]{0}', space=sflag, size = 0x8, scoped, tag = 'scoped memory for tpu_custom_call.1']
    %10 = vsyncpa [#allocation3], 0
    %s11 = scalar_lea.sflag [#allocation3], 1
    %12 = vsyncpa %s11, 0
    loop: start=0, step=1, limit=4
    $region2: #{tpu_custom_call.1} parent=1 // loop_pre_header
      _
    $region3: #{tpu_custom_call.1} parent=1 // loop_header
      %s14 = sphi 0, %s18
      %p15 = scmp.ge.s32.totalorder %s14, 4
      %s24 = sphi 0, %s26
      %s27 = sphi 0, %s24
      %s28 = sphi 0, %s27
      %s44 = sphi 0, %s28
      %s48 = sphi 0, %s48
      %s50 = sphi 0, %s48
      %s51 = sphi 0, %s50
      %s65 = sphi 0, %s51
      %s69 = sphi 0, %s69
      %s71 = sphi 0, %s69
      %s72 = sphi 0, %s71
      %s86 = sphi 0, %s72
      %s90 = sphi 0, %s90
      %s92 = sphi 0, %s90
      %s93 = sphi 0, %s92
      %s107 = sphi 0, %s93
      %s111 = sphi 0, %s111
      %s113 = sphi 0, %s111
      %s114 = sphi 0, %s113
      %s128 = sphi 0, %s114
      %s134 = sphi 0, %s136
      %s137 = sphi 0, %s134
      %s138 = sphi 0, %s137
      %s154 = sphi 0, %s138
    $region4: #{tpu_custom_call.1} parent=1 // loop_header_branch
      %17 = sbr.rel (%p15) target = $region8
    $region5: #{tpu_custom_call.1} parent=1 // loop_body
      %s19 = ssub.s32 %s14, 1
      %s20 = ssub.s32 %s14, 2
      %s21 = sadd.s32 %s14, 1
      %s22 = ssub.s32 %s14, %s21
      %p23 = scmp.eq.s32.totalorder %s22, 0
      %s25 = sadd.s32 %s24, 1
      %s26 = scalar_select %p23, %s24, %s25
      %p29 = pneg %p23
      %p30 = scmp.eq.s32.totalorder %s14, 1
      %p31 = por %p29, %p30
      %p32 = scmp.ne.s32.totalorder %s24, %s27
      %p33 = scmp.eq.s32.totalorder %s14, 0
      %p34 = por %p32, %p33
      %p35 = scmp.ne.s32.totalorder %s24, %s27
      %p36 = scmp.eq.s32.totalorder %s19, 1
      %p37 = por %p35, %p36
      %p38 = scmp.ne.s32.totalorder %s27, %s28
      %p39 = scmp.eq.s32.totalorder %s19, 0
      %p40 = por %p38, %p39
      %p41 = scmp.ne.s32.totalorder %s27, %s28
      %p42 = scmp.eq.s32.totalorder %s20, 1
      %p43 = por %p41, %p42
      %p45 = scmp.ne.s32.totalorder %s28, %s44
      %p46 = scmp.eq.s32.totalorder %s20, 0
      %p47 = por %p45, %p46
      %s49 = sadd.s32 %s48, 1
      %p52 = scmp.eq.s32.totalorder %s14, 1
      %p53 = scmp.ne.s32.totalorder %s48, %s50
      %p54 = scmp.eq.s32.totalorder %s14, 0
      %p55 = por %p53, %p54
      %p56 = scmp.ne.s32.totalorder %s48, %s50
      %p57 = scmp.eq.s32.totalorder %s19, 1
      %p58 = por %p56, %p57
      %p59 = scmp.ne.s32.totalorder %s50, %s51
      %p60 = scmp.eq.s32.totalorder %s19, 0
      %p61 = por %p59, %p60
      %p62 = scmp.ne.s32.totalorder %s50, %s51
      %p63 = scmp.eq.s32.totalorder %s20, 1
      %p64 = por %p62, %p63
      %p66 = scmp.ne.s32.totalorder %s51, %s65
      %p67 = scmp.eq.s32.totalorder %s20, 0
      %p68 = por %p66, %p67
      %s70 = sadd.s32 %s69, 1
      %p73 = scmp.eq.s32.totalorder %s14, 1
      %p74 = scmp.ne.s32.totalorder %s69, %s71
      %p75 = scmp.eq.s32.totalorder %s14, 0
      %p76 = por %p74, %p75
      %p77 = scmp.ne.s32.totalorder %s69, %s71
      %p78 = scmp.eq.s32.totalorder %s19, 1
      %p79 = por %p77, %p78
      %p80 = scmp.ne.s32.totalorder %s71, %s72
      %p81 = scmp.eq.s32.totalorder %s19, 0
      %p82 = por %p80, %p81
      %p83 = scmp.ne.s32.totalorder %s71, %s72
      %p84 = scmp.eq.s32.totalorder %s20, 1
      %p85 = por %p83, %p84
      %p87 = scmp.ne.s32.totalorder %s72, %s86
      %p88 = scmp.eq.s32.totalorder %s20, 0
      %p89 = por %p87, %p88
      %s91 = sadd.s32 %s90, 1
      %p94 = scmp.eq.s32.totalorder %s14, 1
      %p95 = scmp.ne.s32.totalorder %s90, %s92
      %p96 = scmp.eq.s32.totalorder %s14, 0
      %p97 = por %p95, %p96
      %p98 = scmp.ne.s32.totalorder %s90, %s92
      %p99 = scmp.eq.s32.totalorder %s19, 1
      %p100 = por %p98, %p99
      %p101 = scmp.ne.s32.totalorder %s92, %s93
      %p102 = scmp.eq.s32.totalorder %s19, 0
      %p103 = por %p101, %p102
      %p104 = scmp.ne.s32.totalorder %s92, %s93
      %p105 = scmp.eq.s32.totalorder %s20, 1
      %p106 = por %p104, %p105
      %p108 = scmp.ne.s32.totalorder %s93, %s107
      %p109 = scmp.eq.s32.totalorder %s20, 0
      %p110 = por %p108, %p109
      %s112 = sadd.s32 %s111, 1
      %p115 = scmp.eq.s32.totalorder %s14, 1
      %p116 = scmp.ne.s32.totalorder %s111, %s113
      %p117 = scmp.eq.s32.totalorder %s14, 0
      %p118 = por %p116, %p117
      %p119 = scmp.ne.s32.totalorder %s111, %s113
      %p120 = scmp.eq.s32.totalorder %s19, 1
      %p121 = por %p119, %p120
      %p122 = scmp.ne.s32.totalorder %s113, %s114
      %p123 = scmp.eq.s32.totalorder %s19, 0
      %p124 = por %p122, %p123
      %p125 = scmp.ne.s32.totalorder %s113, %s114
      %p126 = scmp.eq.s32.totalorder %s20, 1
      %p127 = por %p125, %p126
      %p129 = scmp.ne.s32.totalorder %s114, %s128
      %p130 = scmp.eq.s32.totalorder %s20, 0
      %p131 = por %p129, %p130
      %s132 = ssub.s32 %s14, %s21
      %p133 = scmp.eq.s32.totalorder %s132, 0
      %s135 = sadd.s32 %s134, 1
      %s136 = scalar_select %p133, %s134, %s135
      %p139 = pneg %p133
      %p140 = scmp.eq.s32.totalorder %s14, 1
      %p141 = por %p139, %p140
      %p142 = scmp.ne.s32.totalorder %s134, %s137
      %p143 = scmp.eq.s32.totalorder %s14, 0
      %p144 = por %p142, %p143
      %p145 = scmp.ne.s32.totalorder %s134, %s137
      %p146 = scmp.eq.s32.totalorder %s19, 1
      %p147 = por %p145, %p146
      %p148 = scmp.ne.s32.totalorder %s137, %s138
      %p149 = scmp.eq.s32.totalorder %s19, 0
      %p150 = por %p148, %p149
      %p151 = scmp.ne.s32.totalorder %s137, %s138
      %p152 = scmp.eq.s32.totalorder %s20, 1
      %p153 = por %p151, %p152
      %p155 = scmp.ne.s32.totalorder %s138, %s154
      %p156 = scmp.eq.s32.totalorder %s20, 0
      %p157 = por %p155, %p156
      %p158 = scmp.le.s32.totalorder 1, %s14
      %p159 = scmp.lt.s32.totalorder %s14, 3
      %p160 = pnand %p158, %p159
      %p161 = pneg %p160
      // Predicated region
      $region9: #{tpu_custom_call.1} parent=5 // pred_check
        _
      $region10: #{tpu_custom_call.1} parent=5 // pred_check_branch
        %163 = sbr.rel (%p160) target = $region12
      $region11: #{tpu_custom_call.1} parent=5 // pred_region
        %s164 = ssub.s32 %s14, 1
        // Predicated region
        $region13: #{tpu_custom_call.1} parent=11 // pred_check
          %p165 = pneg %p61
        $region14: #{tpu_custom_call.1} parent=11 // pred_check_branch
          %167 = sbr.rel (%p165) target = $region16
        $region15: #{tpu_custom_call.1} parent=11 // pred_region
          _
        $region16: #{tpu_custom_call.1} parent=11 // pred_fallthru
          _
        // Predicated region
        $region17: #{tpu_custom_call.1} parent=11 // pred_check
          %p168 = pneg %p82
        $region18: #{tpu_custom_call.1} parent=11 // pred_check_branch
          %170 = sbr.rel (%p168) target = $region20
        $region19: #{tpu_custom_call.1} parent=11 // pred_region
          _
        $region20: #{tpu_custom_call.1} parent=11 // pred_fallthru
          _
        // Predicated region
        $region21: #{tpu_custom_call.1} parent=11 // pred_check
          %p171 = pneg %p103
        $region22: #{tpu_custom_call.1} parent=11 // pred_check_branch
          %173 = sbr.rel (%p171) target = $region24
        $region23: #{tpu_custom_call.1} parent=11 // pred_region
          _
        $region24: #{tpu_custom_call.1} parent=11 // pred_fallthru
          _
        // Predicated region
        $region25: #{tpu_custom_call.1} parent=11 // pred_check
          %p174 = pneg %p124
        $region26: #{tpu_custom_call.1} parent=11 // pred_check_branch
          %176 = sbr.rel (%p174) target = $region28
        $region27: #{tpu_custom_call.1} parent=11 // pred_region
          _
        $region28: #{tpu_custom_call.1} parent=11 // pred_fallthru
          _
      $region12: #{tpu_custom_call.1} parent=5 // pred_fallthru
        _
      %p177 = scmp.lt.s32.totalorder %s14, 2
      // Predicated region
      $region29: #{tpu_custom_call.1} parent=5 // pred_check
        %p178 = pneg %p177
      $region30: #{tpu_custom_call.1} parent=5 // pred_check_branch
        %180 = sbr.rel (%p178) target = $region32
      $region31: #{tpu_custom_call.1} parent=5 // pred_region
        // Predicated region
        $region33: #{tpu_custom_call.1} parent=31 // pred_check
          %p181 = pneg %p34
        $region34: #{tpu_custom_call.1} parent=31 // pred_check_branch
          %183 = sbr.rel (%p181) target = $region36
        $region35: #{tpu_custom_call.1} parent=31 // pred_region
          %s184 = smul.u32 2, %s14
          %p185 = scmp.lt.s32.totalorder %s184, 3
          %s186 = scalar_select %p185, %s184, 3
          %s187 = smul.addr %s186, 4
          %s188 = scalar_lea.vmem %s0, %s187
          %s189 = smul.u32 2, %s14
        $region36: #{tpu_custom_call.1} parent=31 // pred_fallthru
          _
      $region32: #{tpu_custom_call.1} parent=5 // pred_fallthru
        _
      %p190 = scmp.le.s32.totalorder 1, %s14
      %p191 = scmp.lt.s32.totalorder %s14, 3
      %p192 = pnand %p190, %p191
      %p193 = pneg %p192
      // Predicated region
      $region37: #{tpu_custom_call.1} parent=5 // pred_check
        _
      $region38: #{tpu_custom_call.1} parent=5 // pred_check_branch
        %195 = sbr.rel (%p192) target = $region40
      $region39: #{tpu_custom_call.1} parent=5 // pred_region
        %s196 = ssub.s32 %s14, 1
        %s197 = smul.u32 2, %s19
        %p198 = scmp.lt.s32.totalorder %s197, 3
        %s199 = scalar_select %p198, %s197, 3
        %s200 = smul.addr %s199, 4
        %s201 = scalar_lea.vmem %s0, %s200
        %p202 = pneg %p40
        %p203 = pneg %p37
        %p204 = pneg %p61
        %p205 = pneg %p58
        %p206 = pneg %p82
        %p207 = pneg %p79
        %p208 = pneg %p103
        %p209 = pneg %p100
        %p210 = pneg %p124
        %p211 = pneg %p121
        %p212 = pneg %p150
        %p213 = pneg %p147
        %s214 = sand.u32 %s137, 1
        %s215 = scalar_lea.sflag [#allocation3], %s214
        %s216 = sand.u32 %s137, 1
        %s217 = smul.addr %s216, 16
        %s218 = scalar_lea.vmem [#allocation2], %s217
        %s219 = smul.u32 2, %s19
        %p220 = scmp.lt.s32.totalorder %s219, 3
        %s221 = scalar_select %p220, %s219, 3
        %s222 = smul.addr %s221, 4
        %s223 = scalar_lea.vmem %s0, %s222
        %s224 = smul.u32 2, %s19
        %s225 = smul.u32 2, %s19
        %v227 = vld [vmem:[%s223] sm:$0xf]
        %v228 = vld [vmem:[%s223 + $0x4] sm:$0xf]
        %v229 = vld [vmem:[%s1] sm:$0xf]
        %v230 = vld [vmem:[%s1 + $0x4] sm:$0xf]
        %v231 = vld [vmem:[%s1 + $0x8] sm:$0xf]
        %v232 = vld [vmem:[%s1 + $0xc] sm:$0xf]
        %v233 = vld [vmem:[%s1 + $0x10] sm:$0xf]
        %v234 = vld [vmem:[%s1 + $0x14] sm:$0xf]
        %v235 = vld [vmem:[%s2] sm:$0x1]
        %v237 = vperm.slane %v235, 0
        %v241 = vunpack.c.l.b16 %v227
        %v242 = vunpack.c.l.b16 %v228
        %v243 = vpack.c.b16 %v242, %v241
        %v250 = vunpack.c.l.b16 %v229
        %v251 = vunpack.c.l.b16 %v230
        %v252 = vunpack.c.l.b16 %v231
        %v253 = vunpack.c.l.b16 %v232
        %v254 = vunpack.c.l.b16 %v233
        %v255 = vunpack.c.l.b16 %v234
        %v256 = vpack.c.b16 %v251, %v250
        %v257 = vpack.c.b16 %v253, %v252
        %v258 = vpack.c.b16 %v255, %v254
        %vm262 = vcmask 392192
        %v264 = vsel %vm262, %v243, 0
        %266 = vmatpush.bf16.msra.mxu0 0
        %267 = vmatpush.bf16.msra.mxu0 0
        %268 = vmatpush.bf16.msra.mxu0 0
        %269 = vmatpush.bf16.msra.mxu0 0
        %270 = vmatpush.bf16.msra.mxu0 0
        %271 = vmatpush.bf16.msra.mxu0 %v258
        %272 = vmatpush.bf16.msra.mxu0 %v257
        %273 = vmatpush.bf16.msra.mxu0 %v256
        %274 = vmatmul.bf16.gmra.mxu0 %v264
        %v275 = vpop.f32.mrf.mxu0
        %v276 = vadd.f32 %v237, %v275
        %v277 = vpop.f32.mrf.mxu0
        %v278 = vadd.f32 %v237, %v277
        %279 = vdwg.mxu0
        %v280 = vmul.f32 %v276, %v276
        %v281 = vmul.f32 %v278, %v278
        %v282 = vmul.f32 %v276, %v280
        %v283 = vmul.f32 %v278, %v281
        %v284 = vmul.f32 %v282, 0.044715
        %v285 = vmul.f32 %v283, 0.044715
        %v286 = vadd.f32 %v276, %v284
        %v287 = vadd.f32 %v278, %v285
        %v288 = vmul.f32 %v286, 0.7978846
        %v289 = vmul.f32 %v287, 0.7978846
        %v290 = vtanh.pop %v288
        %v291 = vtanh.pop %v289
        %v292 = vadd.f32 %v290, 1.0
        %v293 = vadd.f32 %v291, 1.0
        %v294 = vmul.f32 %v292, 0.5
        %v295 = vmul.f32 %v293, 0.5
        %v296 = vmul.f32 %v276, %v294
        %v297 = vmul.f32 %v278, %v295
        %v298 = vpack.c.bf16 %v297, %v296
        %v299 = vld [vmem:[%s3] sm:$0xf]
        %v300 = vld [vmem:[%s3 + $0x4] sm:$0xf]
        %v301 = vld [vmem:[%s3 + $0x8] sm:$0xf]
        %v302 = vld [vmem:[%s3 + $0xc] sm:$0xf]
        %v303 = vld [vmem:[%s4] sm:$0x1]
        %v305 = vperm.slane %v303, 0
        %v311 = vunpack.c.l.b16 %v299
        %v312 = vunpack.c.l.b16 %v300
        %v313 = vunpack.c.l.b16 %v301
        %v314 = vunpack.c.l.b16 %v302
        %v315 = vpack.c.b16 %v312, %v311
        %v316 = vpack.c.b16 %v314, %v313
        %vm319 = vcmask 261120
        %v321 = vsel %vm319, %v298, 0
        %323 = vmatpush.bf16.msra.mxu0 0
        %324 = vmatpush.bf16.msra.mxu0 0
        %325 = vmatpush.bf16.msra.mxu0 0
        %326 = vmatpush.bf16.msra.mxu0 0
        %327 = vmatpush.bf16.msra.mxu0 0
        %328 = vmatpush.bf16.msra.mxu0 0
        %329 = vmatpush.bf16.msra.mxu0 %v316
        %330 = vmatpush.bf16.msra.mxu0 %v315
        %331 = vmatmul.bf16.gmra.mxu0 %v321
        %v332 = vpop.f32.mrf.mxu0
        %v333 = vadd.f32 %v305, %v332
        %v334 = vpop.f32.mrf.mxu0
        %v335 = vadd.f32 %v305, %v334
        %336 = vdwg.mxu0
        %337 = vst.msk [vmem:[%s218] sm:$0xff] %vm319, %v333
        %338 = vst.msk [vmem:[%s218 + $0x8] sm:$0xff] %vm319, %v335
        %s339 = sand.u32 %s137, 1
        %s340 = scalar_lea.sflag [#allocation3], %s339
        %s341 = sand.u32 %s137, 1
        %s342 = smul.addr %s341, 16
        %s343 = scalar_lea.vmem [#allocation2], %s342
        // Predicated region
        $region41: #{tpu_custom_call.1} parent=39 // pred_check
          %p344 = pneg %p147
        $region42: #{tpu_custom_call.1} parent=39 // pred_check_branch
          %346 = sbr.rel (%p344) target = $region44
        $region43: #{tpu_custom_call.1} parent=39 // pred_region
          %s347 = smul.u32 2, %s19
          %349 = vsyncadd %s340, 0
          %s350 = smul.addr %s347, 8
          %s351 = scalar_lea.hbm %s5, %s350
          %s352 = sshll.u32 %s343, 4
          %s353 = int_to_ptr.vmem [resolvable:$true] %s352
          %s354 = sshll.u32 %s351, 4
          %s355 = int_to_ptr.hbm [resolvable:$true] %s354
          %360 = dma.vmem_to_hbm [thread:$0]  %s353, 256, %s355, %s340, 128, 128, 8
        $region44: #{tpu_custom_call.1} parent=39 // pred_fallthru
          _
      $region40: #{tpu_custom_call.1} parent=5 // pred_fallthru
        _
      %p361 = scmp.le.s32.totalorder 2, %s14
      // Predicated region
      $region45: #{tpu_custom_call.1} parent=5 // pred_check
        %p362 = pneg %p361
      $region46: #{tpu_custom_call.1} parent=5 // pred_check_branch
        %364 = sbr.rel (%p362) target = $region48
      $region47: #{tpu_custom_call.1} parent=5 // pred_region
        %s365 = ssub.s32 %s14, 2
        // Predicated region
        $region49: #{tpu_custom_call.1} parent=47 // pred_check
          %p366 = pneg %p153
        $region50: #{tpu_custom_call.1} parent=47 // pred_check_branch
          %368 = sbr.rel (%p366) target = $region52
        $region51: #{tpu_custom_call.1} parent=47 // pred_region
          %s369 = sand.u32 %s138, 1
          %s370 = scalar_lea.sflag [#allocation3], %s369
          %s371 = sand.u32 %s138, 1
          %s372 = smul.addr %s371, 16
          %s373 = scalar_lea.vmem [#allocation2], %s372
          %375 = dma.done %s370, 256
        $region52: #{tpu_custom_call.1} parent=47 // pred_fallthru
          _
      $region48: #{tpu_custom_call.1} parent=5 // pred_fallthru
        _
    $region6: #{tpu_custom_call.1} parent=1 // loop_footer
      %s18 = sadd.s32 1, %s14
    $region7: #{tpu_custom_call.1} parent=1 // loop_footer_branch
      %13 = sbr.rel target = $region3
    $region8: #{tpu_custom_call.1} parent=1 // loop_exit
      _
    %376 = vsyncpa [#allocation3], 1
    %s377 = scalar_lea.sflag [#allocation3], 1
    %378 = vsyncpa %s377, 1

</llo_original>
